<compile_context>
chip_gen: v7x
topology: tpu7x:2x2x1
jax: 0.10.0
libtpu: 0.0.40
codegen_flags: <defaults>
</compile_context>

<pallas_src>
import functools

import jax
import jax.numpy as jnp
from jax.experimental import pallas as pl
from jax.experimental.pallas import tpu as pltpu

LANE = 128
SUBLANE = 8
MAX_TILE_ROWS = 8192          # 8192*128*4 B = 4 MiB per f32 operand per pipeline buffer


def _cdiv(a, b):
    return -(-a // b)


def _round_up(a, b):
    return _cdiv(a, b) * b


def _vmem_capacity_bytes():
    """Physical VMEM of the local TPU; conservative (v7x, 64 MiB) fallback."""
    try:
        cap = int(pltpu.get_tpu_info().vmem_capacity_bytes)
        if cap >= 32 * 1024 * 1024:
            return cap
    except Exception:
        pass
    return 64 * 1024 * 1024


def _valid_mask(block_idx, shape, tile_rows, n_valid):
    """valid[r, c] == (global flat index < n_valid) for grid block `block_idx`."""
    row = jax.lax.broadcasted_iota(jnp.int32, shape, 0)
    col = jax.lax.broadcasted_iota(jnp.int32, shape, 1)
    gidx = (block_idx * tile_rows + row) * LANE + col
    return gidx < n_valid


def _focal_elementwise(x, t, gamma, w0, w1):
    """Per-element robust focal loss (sigmoid path), f32."""
    prob = jax.nn.sigmoid(x)                       # EUP
    is_one = t == 1
    # prob = (cat(1-p, p) * one_hot(target)).sum(1) -> a select for two classes.
    p = jnp.where(is_one, prob, 1.0 - prob)
    # clamp(p, 1e-8, 1-1e-8): the upper bound rounds to exactly 1.0 in f32, so
    # only the lower clip does anything -> a single maximum.
    p = jnp.maximum(p, 1e-8)
    q = 1.0 - p
    g = float(gamma)
    if g == round(g) and g >= 0.0:
        focus = jax.lax.integer_pow(q, int(round(g)))   # VPU multiplies, no extra EUP work
    else:
        focus = q ** g
    if g < 0.0:
        # For gamma >= 0 and p in [1e-8, 1], focus is already in [0, 1], so the
        # reference clamp(focus, 0, 2) is a mathematical no-op and is skipped.
        focus = jnp.clip(focus, 0.0, 2.0)
    loss = focus * (-jnp.log(p))                   # EUP log
    if (float(w0), float(w1)) != (1.0, 1.0):
        # class_weight gather over 2 classes == a select (skipped for [1, 1]).
        w = jnp.where(is_one, jnp.float32(w1), jnp.float32(w0))
        loss = w * loss
    return loss


def _focal_sum_kernel(logit_ref, target_ref, out_ref, *, gamma, w0, w1,
                      tile_rows, n_valid, num_blocks, mask_tail):
    def partial_sum(apply_mask):
        x = logit_ref[...].astype(jnp.float32)
        t = target_ref[...]
        loss = _focal_elementwise(x, t, gamma, w0, w1)
        if apply_mask:
            # Select (not multiply-by-mask) so garbage in the padded / ragged
            # tail cannot propagate NaNs into the sum.
            valid = _valid_mask(pl.program_id(0), loss.shape, tile_rows, n_valid)
            loss = jnp.where(valid, loss, 0.0)
        # Vectorized per-tile partial reduction down to one (8, 128) vreg.
        return loss.reshape(tile_rows // SUBLANE, SUBLANE, LANE).sum(axis=0)

    if not mask_tail:
        out_ref[...] = partial_sum(False)          # hot path: no mask work at all
    elif num_blocks == 1:
        out_ref[...] = partial_sum(True)
    else:
        is_tail = pl.program_id(0) == num_blocks - 1

        @pl.when(is_tail)
        def _():
            out_ref[...] = partial_sum(True)       # only the last block pays for the mask

        @pl.when(jnp.logical_not(is_tail))
        def _():
            out_ref[...] = partial_sum(False)


def _focal_elem_kernel(logit_ref, target_ref, out_ref, *, gamma, w0, w1):
    x = logit_ref[...].astype(jnp.float32)
    t = target_ref[...]
    # The padded / ragged tail of the output is discarded by the wrapper slice
    # (and OOB writes are dropped), so no in-kernel mask is needed here.
    out_ref[...] = _focal_elementwise(x, t, gamma, w0, w1)


def robust_focal_loss_2d(logit, target, class_weight=None, gamma=2.0,
                         size_average=True):
    """Matches RobustFocalLoss2d.forward(..., type='sigmoid')."""
    if class_weight is None:
        class_weight = [1.0, 1.0]
    w0, w1 = float(class_weight[0]), float(class_weight[1])

    # Stream operands in (near-)native dtypes; casts happen inside the kernel.
    x = jnp.reshape(logit, (-1,))
    if x.dtype not in (jnp.float32, jnp.bfloat16):
        x = x.astype(jnp.float32)
    t = jnp.reshape(target, (-1,))
    if t.dtype == jnp.bool_:
        t = t.astype(jnp.int8)                     # 1 B -> 1 B, minimal HBM traffic
    elif not (jnp.issubdtype(t.dtype, jnp.integer) and t.dtype.itemsize in (1, 2, 4)):
        t = t.astype(jnp.int32)
    n = x.shape[0]

    # Row alignment = native sublane tile of the narrowest streamed dtype
    # (8 rows for 4-byte, 16 for 2-byte, 32 for 1-byte operands).
    row_align = max(SUBLANE, 32 // x.dtype.itemsize, 32 // t.dtype.itemsize)
    align_elems = row_align * LANE
    padded = _round_up(n, align_elems)
    if padded != n:                                # typical NCHW sizes: no pad copy
        x = jnp.pad(x, (0, padded - n))
        t = jnp.pad(t, (0, padded - n))
    rows = padded // LANE
    x2 = x.reshape(rows, LANE)
    t2 = t.reshape(rows, LANE)

    # Generation-aware tile sizing: budget ~1/4 of the scoped-VMEM limit for
    # the double-buffered pipeline buffers; leave the rest for Mosaic temps.
    #   v5e/v6e (128 MiB): limit 96 MiB -> 8192-row tiles on both paths.
    #   v7x / fallback (64 MiB): limit 48 MiB -> 6144 (sum) / 4096 (elem) rows.
    vmem_cap = _vmem_capacity_bytes()
    vmem_limit = (3 * vmem_cap) // 4
    out_bytes = 0 if size_average else 4
    per_row = 2 * LANE * (x.dtype.itemsize + t.dtype.itemsize + out_bytes)
    budget = vmem_limit // 4
    tr = (budget // per_row) // row_align * row_align
    tr = max(row_align, min(MAX_TILE_ROWS, tr))
    tr = min(tr, rows)
    nb = _cdiv(rows, tr)

    # Balance the "parallel" grid across v7x's two TensorCores: even block
    # count with near-equal block sizes (never increases the tile size; only
    # split a single block when it is big enough that the extra ~0.35 us step
    # overhead is negligible on single-TC parts).
    if nb == 1 and rows >= 2 * max(row_align, 1024):
        nb = 2
    if nb > 1:
        nb = _round_up(nb, 2)
        tr = min(tr, _round_up(_cdiv(rows, nb), row_align))
        nb = _cdiv(rows, tr)

    mask_tail = (padded != n) or (rows % tr != 0)

    in_specs = [
        pl.BlockSpec((tr, LANE), lambda i: (i, 0)),   # logits (native float dtype)
        pl.BlockSpec((tr, LANE), lambda i: (i, 0)),   # targets (native int dtype)
    ]
    # NOTE: pl.Buffered(3) on the inputs (v5e) and an in-VMEM accumulator for
    # the sum path (v5e/v6e) were considered; kept the simple parallel-partials
    # design to preserve v7x megacore sharding with one code path.
    compiler_params = pltpu.CompilerParams(
        dimension_semantics=("parallel",),            # independent per-block work
        vmem_limit_bytes=int(vmem_limit),
    )

    if size_average:
        kernel = functools.partial(
            _focal_sum_kernel, gamma=float(gamma), w0=w0, w1=w1,
            tile_rows=tr, n_valid=n, num_blocks=nb, mask_tail=mask_tail)
        partials = pl.pallas_call(
            kernel,
            out_shape=jax.ShapeDtypeStruct((nb, SUBLANE, LANE), jnp.float32),
            grid=(nb,),
            in_specs=in_specs,
            out_specs=pl.BlockSpec((None, SUBLANE, LANE), lambda i: (i, 0, 0)),
            compiler_params=compiler_params,
        )(x2, t2)
        # Tiny (nb, 8, 128) second-stage reduce + mean in plain XLA.
        return jnp.sum(partials) / jnp.float32(n)

    # size_average=False: PyTorch returns the per-element batch_loss of shape (N, 1).
    kernel = functools.partial(_focal_elem_kernel, gamma=float(gamma), w0=w0, w1=w1)
    losses = pl.pallas_call(
        kernel,
        out_shape=jax.ShapeDtypeStruct((rows, LANE), jnp.float32),
        grid=(nb,),
        in_specs=in_specs,
        out_specs=pl.BlockSpec((tr, LANE), lambda i: (i, 0)),
        compiler_params=compiler_params,
    )(x2, t2)
    if padded == n:
        return losses.reshape(n, 1)                   # free reshape, no slice copy
    return losses.reshape(-1)[:n].reshape(n, 1)       # unaligned tail: one slice pass


# ----------------------------- pure-JAX reference -----------------------------

def _reference_elem(logit, target, class_weight, gamma=2.0):
    x = jnp.reshape(logit, (-1,)).astype(jnp.float32)
    t = jnp.reshape(target, (-1,)).astype(jnp.int32)
    cw = jnp.asarray(class_weight, jnp.float32)
    prob = jax.nn.sigmoid(x)
    p = jnp.where(t == 1, prob, 1.0 - prob)
    p = jnp.clip(p, 1e-8, 1.0 - 1e-8)
    focus = jnp.clip((1.0 - p) ** gamma, 0.0, 2.0)
    w = cw[t]
    return -w * focus * jnp.log(p)


def _reference_mean(logit, target, class_weight, gamma=2.0):
    return jnp.mean(_reference_elem(logit, target, class_weight, gamma))


if __name__ == "__main__":
    key = jax.random.PRNGKey(0)
    k1, k2 = jax.random.split(key)
    # NCHW input, single-logit-per-pixel style usage of the sigmoid path.
    logit = jax.random.normal(k1, (2, 4, 16, 16), dtype=jnp.float32)
    target = jax.random.bernoulli(k2, 0.5, (2, 4, 16, 16)).astype(jnp.int32)

    # Mean-reduced path (module defaults: gamma=2, size_average=True, cw=[1,1]).
    loss = robust_focal_loss_2d(logit, target, gamma=2.0, size_average=True)
    jax.block_until_ready(loss)
    ref = _reference_mean(logit, target, [1.0, 1.0], gamma=2.0)
    assert jnp.allclose(loss, ref, rtol=1e-5, atol=1e-6), (loss, ref)

    # Weighted, per-element path (size_average=False returns (N, 1) losses).
    cw = [0.3, 0.7]
    per_elem = robust_focal_loss_2d(logit, target, class_weight=cw, gamma=2.0,
                                    size_average=False)
    jax.block_until_ready(per_elem)
    ref_elem = _reference_elem(logit, target, cw, gamma=2.0)
    assert per_elem.shape == (logit.size, 1), per_elem.shape
    assert jnp.allclose(per_elem[:, 0], ref_elem, rtol=1e-5, atol=1e-5)

    print("KERNEL_OK")
</pallas_src>

<mosaic_0001>
module attributes {stable_mosaic.version = 11 : i64} {
  func.func @_focal_sum_kernel(%arg0: i32, %arg1: memref<16x128xf32, #tpu.memory_space<vmem>>, %arg2: memref<16x128xi32, #tpu.memory_space<vmem>>, %arg3: memref<1x8x128xf32, #tpu.memory_space<vmem>>) attributes {dimension_semantics = [#tpu.dimension_semantics<parallel>], iteration_bounds = array<i64: 1>, scalar_prefetch = 0 : i64, scratch_operands = 0 : i64, tpu.core_type = #tpu.core_type<tc>, window_params = [{transform_indices = @transform_0, window_bounds = array<i64: 16, 128>}, {transform_indices = @transform_1, window_bounds = array<i64: 16, 128>}, {transform_indices = @transform_2, window_bounds = array<i64: 1, 8, 128>}]} {
    %c0 = arith.constant 0 : index
    %c0_0 = arith.constant 0 : index
    %0 = vector.load %arg1[%c0, %c0_0] : memref<16x128xf32, #tpu.memory_space<vmem>>, vector<16x128xf32>
    %c0_1 = arith.constant 0 : index
    %c0_2 = arith.constant 0 : index
    %1 = vector.load %arg2[%c0_1, %c0_2] : memref<16x128xi32, #tpu.memory_space<vmem>>, vector<16x128xi32>
    %2 = arith.negf %0 : vector<16x128xf32>
    %3 = math.exp %2 : vector<16x128xf32>
    %cst = arith.constant 1.000000e+00 : f32
    %4 = vector.broadcast %cst : f32 to vector<16x128xf32>
    %5 = arith.addf %4, %3 : vector<16x128xf32>
    %6 = arith.divf %4, %5 : vector<16x128xf32>
    %c1_i32 = arith.constant 1 : i32
    %7 = vector.broadcast %c1_i32 : i32 to vector<16x128xi32>
    %8 = arith.cmpi eq, %1, %7 : vector<16x128xi32>
    %cst_3 = arith.constant 1.000000e+00 : f32
    %9 = vector.broadcast %cst_3 : f32 to vector<16x128xf32>
    %10 = arith.subf %9, %6 : vector<16x128xf32>
    %11 = arith.select %8, %6, %10 : vector<16x128xi1>, vector<16x128xf32>
    %cst_4 = arith.constant 9.99999993E-9 : f32
    %12 = vector.broadcast %cst_4 : f32 to vector<16x128xf32>
    %13 = arith.maximumf %11, %12 : vector<16x128xf32>
    %cst_5 = arith.constant 1.000000e+00 : f32
    %14 = vector.broadcast %cst_5 : f32 to vector<16x128xf32>
    %15 = arith.subf %14, %13 : vector<16x128xf32>
    %16 = arith.mulf %15, %15 : vector<16x128xf32>
    %17 = math.log %13 : vector<16x128xf32>
    %cst_6 = arith.constant 0.000000e+00 : f32
    %18 = vector.broadcast %cst_6 : f32 to vector<16x128xf32>
    %19 = arith.subf %18, %17 : vector<16x128xf32>
    %20 = arith.mulf %16, %19 : vector<16x128xf32>
    %21 = vector.shape_cast %20 : vector<16x128xf32> to vector<2x8x128xf32>
    %cst_7 = arith.constant dense<0.000000e+00> : vector<8x128xf32>
    %22 = vector.multi_reduction <add>, %21, %cst_7 [0] : vector<2x8x128xf32> to vector<8x128xf32>
    %c0_8 = arith.constant 0 : index
    %c0_9 = arith.constant 0 : index
    %c0_10 = arith.constant 0 : index
    %23 = vector.load %arg3[%c0_8, %c0_9, %c0_10] : memref<1x8x128xf32, #tpu.memory_space<vmem>>, vector<1x8x128xf32>
    %24 = vector.shape_cast %23 : vector<1x8x128xf32> to vector<8x128xf32>
    %25 = vector.shape_cast %22 : vector<8x128xf32> to vector<1x8x128xf32>
    tpu.vector_store %arg3[%c0_8, %c0_9, %c0_10], %25 {strides = array<i32>} : memref<1x8x128xf32, #tpu.memory_space<vmem>>, vector<1x8x128xf32>,
    return
  }
  func.func @transform_0(%arg0: i32) -> (i32, i32) {
    %c0_i32 = arith.constant 0 : i32
    %c0_i32_0 = arith.constant 0 : i32
    return %arg0, %c0_i32 : i32, i32
  }
  func.func @transform_1(%arg0: i32) -> (i32, i32) {
    %c0_i32 = arith.constant 0 : i32
    %c0_i32_0 = arith.constant 0 : i32
    return %arg0, %c0_i32 : i32, i32
  }
  func.func @transform_2(%arg0: i32) -> (i32, i32, i32) {
    %c0_i32 = arith.constant 0 : i32
    %c0_i32_0 = arith.constant 0 : i32
    %c0_i32_1 = arith.constant 0 : i32
    return %arg0, %c0_i32, %c0_i32_0 : i32, i32, i32
  }
}

</mosaic_0001>

<llo_original>
// kernel: tpu_custom_call.1
$region0: #{tpu_custom_call.1}
  #allocation0 [shape = 'u32[]', space=smem, size = 0x4, offset = 0x4, fixed_abs, tag = 'smem constant byte address 0x4 - core index']
  #allocation1 [shape = 'u32[144,128]{1,0:T(1,128)}', space=vmem, size = 0x12000, scoped, tag = 'internal scratch']
  %s0 = inlined_call_operand.hbm [shape: f32[16,128], index: 0, kind: input, shape index: {}]
  %s1 = inlined_call_operand.hbm [shape: s32[16,128], index: 1, kind: input, shape index: {}]
  %s2 = inlined_call_operand.hbm [shape: f32[1,8,128], index: 2, kind: output, shape index: {}]
  %s3 = sld [smem:[#allocation0]]
  $region26: #{tpu_custom_call.1} parent=0
    _
  %s5 = ssub.s32 1, %s3
  %s6 = scalar_select 0, %s5, %s3
  $region1: #{tpu_custom_call.1} parent=0
    #allocation2 [shape = 'u8[8192]{0}', space=vmem, size = 0x2000, scoped, tag = 'input window, operand 0, single buffered']
    #allocation3 [shape = 's32[1]{0}', space=sflag, size = 0x4, scoped, tag = 'scoped memory for tpu_custom_call.1']
    #allocation4 [shape = 's32[1]{0}', space=sflag, size = 0x4, scoped, tag = 'scoped memory for tpu_custom_call.1']
    #allocation5 [shape = 'u8[8192]{0}', space=vmem, size = 0x2000, scoped, tag = 'input window, operand 1, single buffered']
    #allocation6 [shape = 's32[1]{0}', space=sflag, size = 0x4, scoped, tag = 'scoped memory for tpu_custom_call.1']
    #allocation7 [shape = 'u8[4096]{0}', space=vmem, size = 0x1000, scoped, tag = 'output window, operand 0, single buffered']
    %7 = vsyncpa [#allocation3], 0
    %8 = vsyncpa [#allocation6], 0
    %9 = vsyncpa [#allocation4], 0
    // Predicated region
    $region2: #{tpu_custom_call.1} parent=1 // pred_check
      _
    $region3: #{tpu_custom_call.1} parent=1 // pred_check_branch
      %11 = sbr.rel (0) target = $region5
    $region4: #{tpu_custom_call.1} parent=1 // pred_region
      %s13 = ssub.s32 256, 256
      %14 = vsyncadd [#allocation3], %s13
      %s15 = sshll.u32 [#allocation2], 4
      %s16 = int_to_ptr.vmem [resolvable:$true] %s15
      %21 = dma.hbm_to_vmem [thread:$0]  %s0, 256, %s16, [#allocation3], 128, 128, 8
    $region5: #{tpu_custom_call.1} parent=1 // pred_fallthru
      _
    // Predicated region
    $region6: #{tpu_custom_call.1} parent=1 // pred_check
      _
    $region7: #{tpu_custom_call.1} parent=1 // pred_check_branch
      %23 = sbr.rel (0) target = $region9
    $region8: #{tpu_custom_call.1} parent=1 // pred_region
      %s25 = ssub.s32 256, 256
      %26 = vsyncadd [#allocation6], %s25
      %s27 = sshll.u32 [#allocation5], 4
      %s28 = int_to_ptr.vmem [resolvable:$true] %s27
      %33 = dma.hbm_to_vmem [thread:$0]  %s1, 256, %s28, [#allocation6], 128, 128, 8
    $region9: #{tpu_custom_call.1} parent=1 // pred_fallthru
      _
    // Predicated region
    $region10: #{tpu_custom_call.1} parent=1 // pred_check
      _
    $region11: #{tpu_custom_call.1} parent=1 // pred_check_branch
      %35 = sbr.rel (0) target = $region13
    $region12: #{tpu_custom_call.1} parent=1 // pred_region
      %36 = dma.done [#allocation3], 256
    $region13: #{tpu_custom_call.1} parent=1 // pred_fallthru
      _
    // Predicated region
    $region14: #{tpu_custom_call.1} parent=1 // pred_check
      _
    $region15: #{tpu_custom_call.1} parent=1 // pred_check_branch
      %38 = sbr.rel (0) target = $region17
    $region16: #{tpu_custom_call.1} parent=1 // pred_region
      %39 = dma.done [#allocation6], 256
    $region17: #{tpu_custom_call.1} parent=1 // pred_fallthru
      _
    %v40 = vld [vmem:[#allocation2] sm:$0xff]
    %v41 = vld [vmem:[#allocation2 + $0x8] sm:$0xff]
    %v42 = vld [vmem:[#allocation5] sm:$0xff]
    %v43 = vld [vmem:[#allocation5 + $0x8] sm:$0xff]
    %v44 = vxor.u32 %v40, 2147483648
    %v45 = vxor.u32 %v41, 2147483648
    %v46 = vmul.f32 %v44, 1.442695
    %v47 = vpow.pop %v46
    %v48 = vmul.f32 %v45, 1.442695
    %v49 = vpow.pop %v48
    %v50 = vadd.f32 %v47, 1.0
    %v51 = vadd.f32 %v49, 1.0
    %v52 = vrcp.pop %v50
    %v53 = vmul.f32 1.0, %v52
    %v54 = vrcp.pop %v51
    %v55 = vmul.f32 1.0, %v54
    %vm56 = vcmp.eq.s32.totalorder %v42, 1
    %vm57 = vcmp.eq.s32.totalorder %v43, 1
    %v58 = vsub.f32 1.0, %v53
    %v59 = vsub.f32 1.0, %v55
    %v60 = vsel %vm56, %v53, %v58
    %v61 = vsel %vm57, %v55, %v59
    %v62 = vmax.f32 %v60, 1e-08
    %v63 = vmax.f32 %v61, 1e-08
    %v64 = vsub.f32 1.0, %v62
    %v65 = vsub.f32 1.0, %v63
    %v66 = vmul.f32 %v64, %v64
    %v67 = vmul.f32 %v65, %v65
    %v68 = vlog2.pop %v62
    %v69 = vmul.f32 %v68, 0.6931472
    %v70 = vlog2.pop %v63
    %v71 = vmul.f32 %v70, 0.6931472
    %v72 = vsub.f32 0.0, %v69
    %v73 = vsub.f32 0.0, %v71
    %v74 = vmul.f32 %v66, %v72
    %v75 = vmul.f32 %v67, %v73
    %v76 = vadd.f32 %v74, %v75
    %77 = vst [vmem:[#allocation7] sm:$0xff] %v76
    // Predicated region
    $region18: #{tpu_custom_call.1} parent=1 // pred_check
      _
    $region19: #{tpu_custom_call.1} parent=1 // pred_check_branch
      %79 = sbr.rel (0) target = $region21
    $region20: #{tpu_custom_call.1} parent=1 // pred_region
      %s81 = ssub.s32 128, 128
      %82 = vsyncadd [#allocation4], %s81
      %s84 = sshll.u32 [#allocation7], 4
      %s85 = int_to_ptr.vmem [resolvable:$true] %s84
      %87 = dma.vmem_to_hbm [thread:$0]  %s85, 128, %s2, [#allocation4]
    $region21: #{tpu_custom_call.1} parent=1 // pred_fallthru
      _
    // Predicated region
    $region22: #{tpu_custom_call.1} parent=1 // pred_check
      _
    $region23: #{tpu_custom_call.1} parent=1 // pred_check_branch
      %89 = sbr.rel (0) target = $region25
    $region24: #{tpu_custom_call.1} parent=1 // pred_region
      %90 = dma.done [#allocation4], 128
    $region25: #{tpu_custom_call.1} parent=1 // pred_fallthru
      _
    %91 = vsyncpa [#allocation3], 1
    %92 = vsyncpa [#allocation6], 1
    %93 = vsyncpa [#allocation4], 1

</llo_original>
